<compile_context>
chip_gen: v7x
topology: tpu7x:2x2x1
jax: 0.10.0
libtpu: 0.0.40
codegen_flags: <defaults>
</compile_context>

<pallas_src>
import functools

import jax
import jax.numpy as jnp
from jax.experimental import pallas as pl
from jax.experimental.pallas import tpu as pltpu

NEG_SLOPE = 0.01   # nn.LeakyReLU default
BN_EPS = 1e-5      # nn.BatchNorm1d default
OUT_DIM = 48       # DenseResnet final width (from the spec: blocks_dims[-1] == 48)


def _leaky_relu(x):
    return jnp.where(x > 0, x, NEG_SLOPE * x)


def _round_up(x, m):
    return -(-x // m) * m


# ------------------------------------------------------------------
# Fused kernel: relu-layer + block_0 + block_1 (resize) in one pass.
#   w_ref    : [5, D, D]  stacked (padded / BN-folded) weights
#   bias_ref : [8, D]     stacked (padded / BN-folded) bias rows
# ------------------------------------------------------------------
def fslayer_fused_kernel(x_ref, w_ref, bias_ref, o_ref, *, out_dim):
    x = x_ref[...]

    def mm(a, k):
        return jnp.dot(a, w_ref[k], preferred_element_type=jnp.float32)

    def brow(k):
        return bias_ref[k:k + 1, :]

    # layer 1: hidden = relu(x @ params_1 + bias_1)
    h0 = jnp.maximum(mm(x, 0) + brow(0), 0.0)

    # block_0 (128 -> 128, no resize; BN folded into the linears)
    a1 = _leaky_relu(mm(h0, 1) + brow(1))
    h1 = _leaky_relu(mm(a1, 2) + brow(2) + h0)

    # block_1 (128 -> 48, resize branch), lane-padded to D:
    #   w_ref[3] packs  lin1+bn1  in lanes [0, out)  and  resize (lin_r+bn_r)
    #   in lanes [ident_off, ident_off+out).  LeakyReLU is applied only to the
    #   lin1 lanes; the identity lanes pass through an eye(out) sub-block of
    #   w_ref[4], so the residual add happens inside the second matmul.
    pre = mm(h1, 3) + brow(3)
    lane = jax.lax.broadcasted_iota(jnp.int32, pre.shape, 1)
    act = jnp.where(lane < out_dim, _leaky_relu(pre), pre)
    out = mm(act, 4) + brow(4)
    o_ref[...] = _leaky_relu(out)


# ------------------------------------------------------------------
# Wrapper: batch-tiled grid, lane-dense padded output, slice back to 48.
# ------------------------------------------------------------------
def fslayer_forward(x, fused, f_index, *, tile_b=128):
    D = fused["dim"]
    out_dim = fused["out_dim"]
    B, F = x.shape

    Bp = max(8, _round_up(B, 8))
    tb = min(tile_b, Bp)
    Bp = _round_up(Bp, tb)

    x_pad = jnp.zeros((Bp, D), jnp.float32).at[:B, :F].set(x.astype(jnp.float32))

    kernel = functools.partial(fslayer_fused_kernel, out_dim=out_dim)
    out = pl.pallas_call(
        kernel,
        out_shape=jax.ShapeDtypeStruct((Bp, D), jnp.float32),
        grid=(Bp // tb,),
        in_specs=[
            pl.BlockSpec((tb, D), lambda i: (i, 0)),
            pl.BlockSpec(fused["w_pack"].shape, lambda i: (0, 0, 0)),
            pl.BlockSpec(fused["bias_pack"].shape, lambda i: (0, 0)),
        ],
        out_specs=pl.BlockSpec((tb, D), lambda i: (i, 0)),
        compiler_params=pltpu.CompilerParams(
            dimension_semantics=("parallel",)),
    )(x_pad, fused["w_pack"], fused["bias_pack"])

    fs_rep = out[:B, :out_dim]
    fs_feature = jnp.take(x, f_index, axis=-1)
    return fs_rep, fs_feature, f_index


# hoisted: depends only on params_1, computed once per parameter set
def select_feature_indices(params_1, num_features):
    row_energy = jnp.sum(jnp.square(params_1), axis=1)
    _, f_index = jax.lax.top_k(row_energy, num_features)
    return f_index


# ------------------------------------------------------------------
# Parameter init (raw, PyTorch-like) and fold/pack into kernel operands.
# ------------------------------------------------------------------
def _linear_params(key, in_dim, out_dim):
    kw, kb = jax.random.split(key)
    bound = 1.0 / jnp.sqrt(in_dim)
    w = jax.random.uniform(kw, (in_dim, out_dim), jnp.float32, -bound, bound)  # [in, out]
    b = jax.random.uniform(kb, (out_dim,), jnp.float32, -bound, bound)
    return w, b


def _bn_params(out_dim):
    return dict(gamma=jnp.ones((out_dim,), jnp.float32),
                beta=jnp.zeros((out_dim,), jnp.float32),
                mean=jnp.zeros((out_dim,), jnp.float32),
                var=jnp.ones((out_dim,), jnp.float32))


def _fold_bn(w, b, bn):
    scale = bn["gamma"] / jnp.sqrt(bn["var"] + BN_EPS)
    return w * scale[None, :], (b - bn["mean"]) * scale + bn["beta"]


def init_fslayer(key, input_feature_dim, fs_rep_hidden):
    H4 = fs_rep_hidden * 4
    keys = jax.random.split(key, 8)
    raw = {}
    raw["params_1"] = jax.random.uniform(keys[0], (input_feature_dim, H4), jnp.float32)
    raw["bias_1"] = jax.random.uniform(keys[1], (H4,), jnp.float32)

    # block_0: H4 -> H4, no resize
    w1, b1 = _linear_params(keys[2], H4, H4)
    w2, b2 = _linear_params(keys[3], H4, H4)
    raw["block0"] = dict(w1=w1, b1=b1, bn1=_bn_params(H4),
                         w2=w2, b2=b2, bn2=_bn_params(H4))

    # block_1: H4 -> 48, with resize (Linear(H4,48) + BN(48))
    w1, b1 = _linear_params(keys[4], H4, OUT_DIM)
    w2, b2 = _linear_params(keys[5], OUT_DIM, OUT_DIM)
    wr, br = _linear_params(keys[6], H4, OUT_DIM)
    raw["block1"] = dict(w1=w1, b1=b1, bn1=_bn_params(OUT_DIM),
                         w2=w2, b2=b2, bn2=_bn_params(OUT_DIM),
                         wr=wr, br=br, bnr=_bn_params(OUT_DIM))
    return raw


def fold_and_pack(raw, input_feature_dim, fs_rep_hidden):
    H4 = fs_rep_hidden * 4
    out = OUT_DIM
    ident_off = _round_up(out, 8)
    D = _round_up(max(input_feature_dim, H4, ident_off + out), 128)
    assert ident_off + out <= D

    b0, b1 = raw["block0"], raw["block1"]
    a_w1, a_b1 = _fold_bn(b0["w1"], b0["b1"], b0["bn1"])
    a_w2, a_b2 = _fold_bn(b0["w2"], b0["b2"], b0["bn2"])
    c_w1, c_b1 = _fold_bn(b1["w1"], b1["b1"], b1["bn1"])
    c_w2, c_b2 = _fold_bn(b1["w2"], b1["b2"], b1["bn2"])
    c_wr, c_br = _fold_bn(b1["wr"], b1["br"], b1["bnr"])

    w_pack = jnp.zeros((5, D, D), jnp.float32)
    w_pack = w_pack.at[0, :input_feature_dim, :H4].set(raw["params_1"])
    w_pack = w_pack.at[1, :H4, :H4].set(a_w1)
    w_pack = w_pack.at[2, :H4, :H4].set(a_w2)
    # block_1 first matmul: lin1+bn1 in lanes [0,out), resize in lanes [ident_off, ident_off+out)
    w_pack = w_pack.at[3, :H4, :out].set(c_w1)
    w_pack = w_pack.at[3, :H4, ident_off:ident_off + out].set(c_wr)
    # block_1 second matmul: lin2+bn2 plus identity routing (eye sub-block)
    w_pack = w_pack.at[4, :out, :out].set(c_w2)
    w_pack = w_pack.at[4, ident_off:ident_off + out, :out].set(jnp.eye(out, dtype=jnp.float32))

    bias_pack = jnp.zeros((8, D), jnp.float32)
    bias_pack = bias_pack.at[0, :H4].set(raw["bias_1"])
    bias_pack = bias_pack.at[1, :H4].set(a_b1)
    bias_pack = bias_pack.at[2, :H4].set(a_b2)
    bias_pack = bias_pack.at[3, :out].set(c_b1)
    bias_pack = bias_pack.at[3, ident_off:ident_off + out].set(c_br)
    bias_pack = bias_pack.at[4, :out].set(c_b2)

    return dict(w_pack=w_pack, bias_pack=bias_pack, dim=D, out_dim=out)


# ------------------------------------------------------------------
# Pure-JAX reference (eval-mode BN), for a correctness check.
# ------------------------------------------------------------------
def _bn_eval(x, bn):
    scale = bn["gamma"] / jnp.sqrt(bn["var"] + BN_EPS)
    return (x - bn["mean"]) * scale + bn["beta"]


def reference_forward(x, raw, num_features):
    dot = functools.partial(jnp.dot, precision=jax.lax.Precision.HIGHEST)
    h0 = jnp.maximum(dot(x, raw["params_1"]) + raw["bias_1"], 0.0)
    b0 = raw["block0"]
    o = _leaky_relu(_bn_eval(dot(h0, b0["w1"]) + b0["b1"], b0["bn1"]))
    o = _bn_eval(dot(o, b0["w2"]) + b0["b2"], b0["bn2"])
    h1 = _leaky_relu(o + h0)
    b1 = raw["block1"]
    o = _leaky_relu(_bn_eval(dot(h1, b1["w1"]) + b1["b1"], b1["bn1"]))
    o = _bn_eval(dot(o, b1["w2"]) + b1["b2"], b1["bn2"])
    ident = _bn_eval(dot(h1, b1["wr"]) + b1["br"], b1["bnr"])
    fs = _leaky_relu(o + ident)
    energy = jnp.sum(jnp.square(raw["params_1"]), axis=1)
    _, f_index = jax.lax.top_k(energy, num_features)
    return fs, jnp.take(x, f_index, axis=-1), f_index


if __name__ == "__main__":
    B = 8
    INPUT_FEATURE_DIM = 64
    FS_REP_HIDDEN = 32       # -> hidden width 128
    NUM_FEATURES = 16

    key = jax.random.PRNGKey(0)
    k_params, k_x = jax.random.split(key)
    raw = init_fslayer(k_params, INPUT_FEATURE_DIM, FS_REP_HIDDEN)
    fused = fold_and_pack(raw, INPUT_FEATURE_DIM, FS_REP_HIDDEN)
    x = jax.random.normal(k_x, (B, INPUT_FEATURE_DIM), jnp.float32)

    # hoisted out of the forward: depends only on params_1
    f_index = select_feature_indices(raw["params_1"], NUM_FEATURES)

    fs_rep, fs_feature, f_index = fslayer_forward(x, fused, f_index)
    jax.block_until_ready((fs_rep, fs_feature, f_index))

    assert fs_rep.shape == (B, OUT_DIM)
    assert fs_feature.shape == (B, NUM_FEATURES)
    assert f_index.shape == (NUM_FEATURES,)

    ref_fs, ref_feat, ref_idx = reference_forward(x, raw, NUM_FEATURES)
    assert jnp.array_equal(f_index, ref_idx)
    assert jnp.allclose(fs_feature, ref_feat)
    assert jnp.allclose(fs_rep, ref_fs, atol=2e-2, rtol=2e-2)

    print("KERNEL_OK")
</pallas_src>

<mosaic_0001>
module attributes {stable_mosaic.version = 11 : i64} {
  func.func @fslayer_fused_kernel(%arg0: i32, %arg1: memref<8x128xf32, #tpu.memory_space<vmem>>, %arg2: memref<5x128x128xf32, #tpu.memory_space<vmem>>, %arg3: memref<8x128xf32, #tpu.memory_space<vmem>>, %arg4: memref<8x128xf32, #tpu.memory_space<vmem>>) attributes {dimension_semantics = [#tpu.dimension_semantics<parallel>], iteration_bounds = array<i64: 1>, scalar_prefetch = 0 : i64, scratch_operands = 0 : i64, tpu.core_type = #tpu.core_type<tc>, window_params = [{transform_indices = @transform_0, window_bounds = array<i64: 8, 128>}, {pipeline_mode = #tpu.pipeline_mode<synchronous>, transform_indices = @transform_1, window_bounds = array<i64: 5, 128, 128>}, {pipeline_mode = #tpu.pipeline_mode<synchronous>, transform_indices = @transform_2, window_bounds = array<i64: 8, 128>}, {transform_indices = @transform_3, window_bounds = array<i64: 8, 128>}]} {
    %c0 = arith.constant 0 : index
    %c0_0 = arith.constant 0 : index
    %0 = vector.load %arg1[%c0, %c0_0] : memref<8x128xf32, #tpu.memory_space<vmem>>, vector<8x128xf32>
    %c0_1 = arith.constant 0 : index
    %c0_2 = arith.constant 0 : index
    %c0_3 = arith.constant 0 : index
    %1 = vector.load %arg2[%c0_1, %c0_2, %c0_3] : memref<5x128x128xf32, #tpu.memory_space<vmem>>, vector<1x128x128xf32>
    %2 = vector.shape_cast %1 : vector<1x128x128xf32> to vector<128x128xf32>
    %cst = arith.constant dense<0.000000e+00> : vector<8x128xf32>
    %3 = tpu.matmul %0, %2, %cst {dimension_numbers = #tpu.dot_dimension_numbers<[1], [0], [0], [1], [0, 0, 1, 1], [], []>} : vector<8x128xf32>, vector<128x128xf32>, vector<8x128xf32> -> vector<8x128xf32>
    %c0_4 = arith.constant 0 : index
    %c0_5 = arith.constant 0 : index
    %4 = vector.load %arg3[%c0_4, %c0_5] : memref<8x128xf32, #tpu.memory_space<vmem>>, vector<1x128xf32>
    %5 = vector.broadcast %4 : vector<1x128xf32> to vector<8x128xf32>
    %6 = arith.addf %3, %5 : vector<8x128xf32>
    %cst_6 = arith.constant 0.000000e+00 : f32
    %7 = vector.broadcast %cst_6 : f32 to vector<8x128xf32>
    %8 = arith.maximumf %6, %7 : vector<8x128xf32>
    %c1 = arith.constant 1 : index
    %c0_7 = arith.constant 0 : index
    %c0_8 = arith.constant 0 : index
    %9 = vector.load %arg2[%c1, %c0_7, %c0_8] : memref<5x128x128xf32, #tpu.memory_space<vmem>>, vector<1x128x128xf32>
    %10 = vector.shape_cast %9 : vector<1x128x128xf32> to vector<128x128xf32>
    %cst_9 = arith.constant dense<0.000000e+00> : vector<8x128xf32>
    %11 = tpu.matmul %8, %10, %cst_9 {dimension_numbers = #tpu.dot_dimension_numbers<[1], [0], [0], [1], [0, 0, 1, 1], [], []>} : vector<8x128xf32>, vector<128x128xf32>, vector<8x128xf32> -> vector<8x128xf32>
    %c1_10 = arith.constant 1 : index
    %c0_11 = arith.constant 0 : index
    %12 = vector.load %arg3[%c1_10, %c0_11] : memref<8x128xf32, #tpu.memory_space<vmem>>, vector<1x128xf32>
    %13 = vector.broadcast %12 : vector<1x128xf32> to vector<8x128xf32>
    %14 = arith.addf %11, %13 : vector<8x128xf32>
    %cst_12 = arith.constant 0.000000e+00 : f32
    %15 = vector.broadcast %cst_12 : f32 to vector<8x128xf32>
    %16 = arith.cmpf ogt, %14, %15 : vector<8x128xf32>
    %cst_13 = arith.constant 0.00999999977 : f32
    %17 = vector.broadcast %cst_13 : f32 to vector<8x128xf32>
    %18 = arith.mulf %17, %14 : vector<8x128xf32>
    %19 = arith.select %16, %14, %18 : vector<8x128xi1>, vector<8x128xf32>
    %c2 = arith.constant 2 : index
    %c0_14 = arith.constant 0 : index
    %c0_15 = arith.constant 0 : index
    %20 = vector.load %arg2[%c2, %c0_14, %c0_15] : memref<5x128x128xf32, #tpu.memory_space<vmem>>, vector<1x128x128xf32>
    %21 = vector.shape_cast %20 : vector<1x128x128xf32> to vector<128x128xf32>
    %cst_16 = arith.constant dense<0.000000e+00> : vector<8x128xf32>
    %22 = tpu.matmul %19, %21, %cst_16 {dimension_numbers = #tpu.dot_dimension_numbers<[1], [0], [0], [1], [0, 0, 1, 1], [], []>} : vector<8x128xf32>, vector<128x128xf32>, vector<8x128xf32> -> vector<8x128xf32>
    %c2_17 = arith.constant 2 : index
    %c0_18 = arith.constant 0 : index
    %23 = vector.load %arg3[%c2_17, %c0_18] : memref<8x128xf32, #tpu.memory_space<vmem>>, vector<1x128xf32>
    %24 = vector.broadcast %23 : vector<1x128xf32> to vector<8x128xf32>
    %25 = arith.addf %22, %24 : vector<8x128xf32>
    %26 = arith.addf %25, %8 : vector<8x128xf32>
    %cst_19 = arith.constant 0.000000e+00 : f32
    %27 = vector.broadcast %cst_19 : f32 to vector<8x128xf32>
    %28 = arith.cmpf ogt, %26, %27 : vector<8x128xf32>
    %cst_20 = arith.constant 0.00999999977 : f32
    %29 = vector.broadcast %cst_20 : f32 to vector<8x128xf32>
    %30 = arith.mulf %29, %26 : vector<8x128xf32>
    %31 = arith.select %28, %26, %30 : vector<8x128xi1>, vector<8x128xf32>
    %c3 = arith.constant 3 : index
    %c0_21 = arith.constant 0 : index
    %c0_22 = arith.constant 0 : index
    %32 = vector.load %arg2[%c3, %c0_21, %c0_22] : memref<5x128x128xf32, #tpu.memory_space<vmem>>, vector<1x128x128xf32>
    %33 = vector.shape_cast %32 : vector<1x128x128xf32> to vector<128x128xf32>
    %cst_23 = arith.constant dense<0.000000e+00> : vector<8x128xf32>
    %34 = tpu.matmul %31, %33, %cst_23 {dimension_numbers = #tpu.dot_dimension_numbers<[1], [0], [0], [1], [0, 0, 1, 1], [], []>} : vector<8x128xf32>, vector<128x128xf32>, vector<8x128xf32> -> vector<8x128xf32>
    %c3_24 = arith.constant 3 : index
    %c0_25 = arith.constant 0 : index
    %35 = vector.load %arg3[%c3_24, %c0_25] : memref<8x128xf32, #tpu.memory_space<vmem>>, vector<1x128xf32>
    %36 = vector.broadcast %35 : vector<1x128xf32> to vector<8x128xf32>
    %37 = arith.addf %34, %36 : vector<8x128xf32>
    %38 = tpu.iota {dimensions = array<i32: 1>} : vector<8x128xi32>
    %c48_i32 = arith.constant 48 : i32
    %39 = vector.broadcast %c48_i32 : i32 to vector<8x128xi32>
    %40 = arith.cmpi slt, %38, %39 : vector<8x128xi32>
    %cst_26 = arith.constant 0.000000e+00 : f32
    %41 = vector.broadcast %cst_26 : f32 to vector<8x128xf32>
    %42 = arith.cmpf ogt, %37, %41 : vector<8x128xf32>
    %cst_27 = arith.constant 0.00999999977 : f32
    %43 = vector.broadcast %cst_27 : f32 to vector<8x128xf32>
    %44 = arith.mulf %43, %37 : vector<8x128xf32>
    %45 = arith.select %42, %37, %44 : vector<8x128xi1>, vector<8x128xf32>
    %46 = arith.select %40, %45, %37 : vector<8x128xi1>, vector<8x128xf32>
    %c4 = arith.constant 4 : index
    %c0_28 = arith.constant 0 : index
    %c0_29 = arith.constant 0 : index
    %47 = vector.load %arg2[%c4, %c0_28, %c0_29] : memref<5x128x128xf32, #tpu.memory_space<vmem>>, vector<1x128x128xf32>
    %48 = vector.shape_cast %47 : vector<1x128x128xf32> to vector<128x128xf32>
    %cst_30 = arith.constant dense<0.000000e+00> : vector<8x128xf32>
    %49 = tpu.matmul %46, %48, %cst_30 {dimension_numbers = #tpu.dot_dimension_numbers<[1], [0], [0], [1], [0, 0, 1, 1], [], []>} : vector<8x128xf32>, vector<128x128xf32>, vector<8x128xf32> -> vector<8x128xf32>
    %c4_31 = arith.constant 4 : index
    %c0_32 = arith.constant 0 : index
    %50 = vector.load %arg3[%c4_31, %c0_32] : memref<8x128xf32, #tpu.memory_space<vmem>>, vector<1x128xf32>
    %51 = vector.broadcast %50 : vector<1x128xf32> to vector<8x128xf32>
    %52 = arith.addf %49, %51 : vector<8x128xf32>
    %cst_33 = arith.constant 0.000000e+00 : f32
    %53 = vector.broadcast %cst_33 : f32 to vector<8x128xf32>
    %54 = arith.cmpf ogt, %52, %53 : vector<8x128xf32>
    %cst_34 = arith.constant 0.00999999977 : f32
    %55 = vector.broadcast %cst_34 : f32 to vector<8x128xf32>
    %56 = arith.mulf %55, %52 : vector<8x128xf32>
    %57 = arith.select %54, %52, %56 : vector<8x128xi1>, vector<8x128xf32>
    %c0_35 = arith.constant 0 : index
    %c0_36 = arith.constant 0 : index
    %58 = vector.load %arg4[%c0_35, %c0_36] : memref<8x128xf32, #tpu.memory_space<vmem>>, vector<8x128xf32>
    tpu.vector_store %arg4[%c0_35, %c0_36], %57 {strides = array<i32>} : memref<8x128xf32, #tpu.memory_space<vmem>>, vector<8x128xf32>,
    return
  }
  func.func @transform_0(%arg0: i32) -> (i32, i32) {
    %c0_i32 = arith.constant 0 : i32
    %c0_i32_0 = arith.constant 0 : i32
    return %arg0, %c0_i32 : i32, i32
  }
  func.func @transform_1(%arg0: i32) -> (i32, i32, i32) {
    %c0_i32 = arith.constant 0 : i32
    %c0_i32_0 = arith.constant 0 : i32
    %c0_i32_1 = arith.constant 0 : i32
    %c0_i32_2 = arith.constant 0 : i32
    return %c0_i32, %c0_i32_0, %c0_i32_1 : i32, i32, i32
  }
  func.func @transform_2(%arg0: i32) -> (i32, i32) {
    %c0_i32 = arith.constant 0 : i32
    %c0_i32_0 = arith.constant 0 : i32
    %c0_i32_1 = arith.constant 0 : i32
    return %c0_i32, %c0_i32_0 : i32, i32
  }
  func.func @transform_3(%arg0: i32) -> (i32, i32) {
    %c0_i32 = arith.constant 0 : i32
    %c0_i32_0 = arith.constant 0 : i32
    return %arg0, %c0_i32 : i32, i32
  }
}

</mosaic_0001>

<llo_original>
// kernel: tpu_custom_call.1
$region0: #{tpu_custom_call.1}
  #allocation0 [shape = 'u32[]', space=smem, size = 0x4, offset = 0x4, fixed_abs, tag = 'smem constant byte address 0x4 - core index']
  #allocation1 [shape = 'u32[144,128]{1,0:T(1,128)}', space=vmem, size = 0x12000, scoped, tag = 'internal scratch']
  %s0 = inlined_call_operand.hbm [shape: f32[8,128], index: 0, kind: input, shape index: {}]
  %s1 = inlined_call_operand.hbm [shape: f32[5,128,128], index: 1, kind: input, shape index: {}]
  %s2 = inlined_call_operand.hbm [shape: f32[8,128], index: 2, kind: input, shape index: {}]
  %s3 = inlined_call_operand.hbm [shape: f32[8,128], index: 3, kind: output, shape index: {}]
  %s4 = sld [smem:[#allocation0]]
  $region34: #{tpu_custom_call.1} parent=0
    _
  %s6 = ssub.s32 1, %s4
  %s7 = scalar_select 0, %s6, %s4
  $region1: #{tpu_custom_call.1} parent=0
    #allocation2 [shape = 'u8[4096]{0}', space=vmem, size = 0x1000, scoped, tag = 'input window, operand 0, single buffered']
    #allocation3 [shape = 's32[1]{0}', space=sflag, size = 0x4, scoped, tag = 'scoped memory for tpu_custom_call.1']
    #allocation4 [shape = 's32[1]{0}', space=sflag, size = 0x4, scoped, tag = 'scoped memory for tpu_custom_call.1']
    #allocation5 [shape = 'u8[327680]{0}', space=vmem, size = 0x50000, scoped, tag = 'input window, operand 1, single buffered']
    #allocation6 [shape = 's32[1]{0}', space=sflag, size = 0x4, scoped, tag = 'scoped memory for tpu_custom_call.1']
    #allocation7 [shape = 'u8[4096]{0}', space=vmem, size = 0x1000, scoped, tag = 'input window, operand 2, single buffered']
    #allocation8 [shape = 'u8[4096]{0}', space=vmem, size = 0x1000, scoped, tag = 'output window, operand 0, single buffered']
    %8 = vsyncpa [#allocation3], 0
    %9 = vsyncpa [#allocation6], 0
    %10 = vsyncpa [#allocation4], 0
    // Predicated region
    $region2: #{tpu_custom_call.1} parent=1 // pred_check
      _
    $region3: #{tpu_custom_call.1} parent=1 // pred_check_branch
      %12 = sbr.rel (0) target = $region5
    $region4: #{tpu_custom_call.1} parent=1 // pred_region
      %s14 = ssub.s32 128, 128
      %15 = vsyncadd [#allocation3], %s14
      %s17 = sshll.u32 [#allocation2], 4
      %s18 = int_to_ptr.vmem [resolvable:$true] %s17
      %20 = dma.hbm_to_vmem [thread:$0]  %s0, 128, %s18, [#allocation3]
    $region5: #{tpu_custom_call.1} parent=1 // pred_fallthru
      _
    // Predicated region
    $region6: #{tpu_custom_call.1} parent=1 // pred_check
      _
    $region7: #{tpu_custom_call.1} parent=1 // pred_check_branch
      %22 = sbr.rel (0) target = $region9
    $region8: #{tpu_custom_call.1} parent=1 // pred_region
      %s24 = ssub.s32 10240, 10240
      %25 = vsyncadd [#allocation6], %s24
      %s26 = sshll.u32 [#allocation5], 4
      %s27 = int_to_ptr.vmem [resolvable:$true] %s26
      %32 = dma.hbm_to_vmem [thread:$0]  %s1, 10240, %s27, [#allocation6], 128, 128, 8
    $region9: #{tpu_custom_call.1} parent=1 // pred_fallthru
      _
    // Predicated region
    $region10: #{tpu_custom_call.1} parent=1 // pred_check
      _
    $region11: #{tpu_custom_call.1} parent=1 // pred_check_branch
      %34 = sbr.rel (0) target = $region13
    $region12: #{tpu_custom_call.1} parent=1 // pred_region
      %s36 = ssub.s32 128, 128
      %37 = vsyncadd [#allocation6], %s36
      %s39 = sshll.u32 [#allocation7], 4
      %s40 = int_to_ptr.vmem [resolvable:$true] %s39
      %42 = dma.hbm_to_vmem [thread:$0]  %s2, 128, %s40, [#allocation6]
    $region13: #{tpu_custom_call.1} parent=1 // pred_fallthru
      _
    // Predicated region
    $region14: #{tpu_custom_call.1} parent=1 // pred_check
      _
    $region15: #{tpu_custom_call.1} parent=1 // pred_check_branch
      %44 = sbr.rel (0) target = $region17
    $region16: #{tpu_custom_call.1} parent=1 // pred_region
      %45 = dma.done [#allocation3], 128
    $region17: #{tpu_custom_call.1} parent=1 // pred_fallthru
      _
    // Predicated region
    $region18: #{tpu_custom_call.1} parent=1 // pred_check
      _
    $region19: #{tpu_custom_call.1} parent=1 // pred_check_branch
      %47 = sbr.rel (0) target = $region21
    $region20: #{tpu_custom_call.1} parent=1 // pred_region
      %48 = dma.done [#allocation6], 10240
    $region21: #{tpu_custom_call.1} parent=1 // pred_fallthru
      _
    // Predicated region
    $region22: #{tpu_custom_call.1} parent=1 // pred_check
      _
    $region23: #{tpu_custom_call.1} parent=1 // pred_check_branch
      %50 = sbr.rel (0) target = $region25
    $region24: #{tpu_custom_call.1} parent=1 // pred_region
      %51 = dma.done [#allocation6], 128
    $region25: #{tpu_custom_call.1} parent=1 // pred_fallthru
      _
    %v52 = vld [vmem:[#allocation2] sm:$0xff]
    %v53 = vld [vmem:[#allocation5] sm:$0xff]
    %v54 = vld [vmem:[#allocation5 + $0x8] sm:$0xff]
    %v55 = vld [vmem:[#allocation5 + $0x10] sm:$0xff]
    %v56 = vld [vmem:[#allocation5 + $0x18] sm:$0xff]
    %v57 = vld [vmem:[#allocation5 + $0x20] sm:$0xff]
    %v58 = vld [vmem:[#allocation5 + $0x28] sm:$0xff]
    %v59 = vld [vmem:[#allocation5 + $0x30] sm:$0xff]
    %v60 = vld [vmem:[#allocation5 + $0x38] sm:$0xff]
    %v61 = vld [vmem:[#allocation5 + $0x40] sm:$0xff]
    %v62 = vld [vmem:[#allocation5 + $0x48] sm:$0xff]
    %v63 = vld [vmem:[#allocation5 + $0x50] sm:$0xff]
    %v64 = vld [vmem:[#allocation5 + $0x58] sm:$0xff]
    %v65 = vld [vmem:[#allocation5 + $0x60] sm:$0xff]
    %v66 = vld [vmem:[#allocation5 + $0x68] sm:$0xff]
    %v67 = vld [vmem:[#allocation5 + $0x70] sm:$0xff]
    %v68 = vld [vmem:[#allocation5 + $0x78] sm:$0xff]
    %v69 = vld [vmem:[#allocation7] sm:$0x1]
    %v70 = vlaneseq
    %v71 = vshrl.u32 %v70, 7
    %v72 = vsub.s32 0, %v71
    %v73 = vrot.slane %v69, %v72
    %74 = vmatprep.subr.mxu0 0.0
    %75 = vmatpush1.msra.mxu0 %v53
    %76 = vmatprep.subr.mxu0 0.0
    %77 = vmatpush1.msra.mxu0 %v54
    %78 = vmatprep.subr.mxu0 0.0
    %79 = vmatpush1.msra.mxu0 %v55
    %80 = vmatprep.subr.mxu0 0.0
    %81 = vmatpush1.msra.mxu0 %v56
    %82 = vmatprep.subr.mxu0 0.0
    %83 = vmatpush1.msra.mxu0 %v57
    %84 = vmatprep.subr.mxu0 0.0
    %85 = vmatpush1.msra.mxu0 %v58
    %86 = vmatprep.subr.mxu0 0.0
    %87 = vmatpush1.msra.mxu0 %v59
    %88 = vmatprep.subr.mxu0 0.0
    %89 = vmatpush1.msra.mxu0 %v60
    %90 = vmatprep.subr.mxu0 0.0
    %91 = vmatpush1.msra.mxu0 %v61
    %92 = vmatprep.subr.mxu0 0.0
    %93 = vmatpush1.msra.mxu0 %v62
    %94 = vmatprep.subr.mxu0 0.0
    %95 = vmatpush1.msra.mxu0 %v63
    %96 = vmatprep.subr.mxu0 0.0
    %97 = vmatpush1.msra.mxu0 %v64
    %98 = vmatprep.subr.mxu0 0.0
    %99 = vmatpush1.msra.mxu0 %v65
    %100 = vmatprep.subr.mxu0 0.0
    %101 = vmatpush1.msra.mxu0 %v66
    %102 = vmatprep.subr.mxu0 0.0
    %103 = vmatpush1.msra.mxu0 %v67
    %104 = vmatprep.subr.mxu0 0.0
    %105 = vmatpush1.msra.mxu0 %v68
    %106 = vmatprep.subr.mxu0 0.0
    %107 = vmatpush1.msra.mxu0 0.0
    %108 = vmatprep.subr.mxu0 0.0
    %109 = vmatpush1.msra.mxu0 0.0
    %110 = vmatprep.subr.mxu0 0.0
    %111 = vmatpush1.msra.mxu0 0.0
    %112 = vmatprep.subr.mxu0 0.0
    %113 = vmatpush1.msra.mxu0 0.0
    %114 = vmatprep.subr.mxu0 0.0
    %115 = vmatpush1.msra.mxu0 0.0
    %116 = vmatprep.subr.mxu0 0.0
    %117 = vmatpush1.msra.mxu0 0.0
    %118 = vmatprep.subr.mxu0 0.0
    %119 = vmatpush1.msra.mxu0 0.0
    %120 = vmatprep.subr.mxu0 0.0
    %121 = vmatpush1.msra.mxu0 0.0
    %122 = vmatprep.subr.mxu0 0.0
    %123 = vmatpush1.msra.mxu0 0.0
    %124 = vmatprep.subr.mxu0 0.0
    %125 = vmatpush1.msra.mxu0 0.0
    %126 = vmatprep.subr.mxu0 0.0
    %127 = vmatpush1.msra.mxu0 0.0
    %128 = vmatprep.subr.mxu0 0.0
    %129 = vmatpush1.msra.mxu0 0.0
    %130 = vmatprep.subr.mxu0 0.0
    %131 = vmatpush1.msra.mxu0 0.0
    %132 = vmatprep.subr.mxu0 0.0
    %133 = vmatpush1.msra.mxu0 0.0
    %134 = vmatprep.subr.mxu0 0.0
    %135 = vmatpush1.msra.mxu0 0.0
    %136 = vmatprep.subr.mxu0 0.0
    %137 = vmatpush1.msra.mxu0 0.0
    %138 = vmatprep.mubr.f32.mxu0 0.0
    %139 = vmatmul.mubr.f32.gmra.mrb[0].mxu0 %v52
    %v140 = vpop.f32.mrb[0].mxu0
    %v141 = vadd.f32 %v73, %v140
    %v142 = vpop.f32.mrb[0].mxu0
    %143 = vdwg.mxu0
    %v144 = vmax.f32 %v141, 0.0
    %s145 = scalar_lea.vmem [#allocation5], 128
    %v146 = vld [vmem:[%s145] sm:$0xff]
    %v147 = vld [vmem:[%s145 + $0x8] sm:$0xff]
    %v148 = vld [vmem:[%s145 + $0x10] sm:$0xff]
    %v149 = vld [vmem:[%s145 + $0x18] sm:$0xff]
    %v150 = vld [vmem:[%s145 + $0x20] sm:$0xff]
    %v151 = vld [vmem:[%s145 + $0x28] sm:$0xff]
    %v152 = vld [vmem:[%s145 + $0x30] sm:$0xff]
    %v153 = vld [vmem:[%s145 + $0x38] sm:$0xff]
    %v154 = vld [vmem:[%s145 + $0x40] sm:$0xff]
    %v155 = vld [vmem:[%s145 + $0x48] sm:$0xff]
    %v156 = vld [vmem:[%s145 + $0x50] sm:$0xff]
    %v157 = vld [vmem:[%s145 + $0x58] sm:$0xff]
    %v158 = vld [vmem:[%s145 + $0x60] sm:$0xff]
    %v159 = vld [vmem:[%s145 + $0x68] sm:$0xff]
    %v160 = vld [vmem:[%s145 + $0x70] sm:$0xff]
    %v161 = vld [vmem:[%s145 + $0x78] sm:$0xff]
    %v162 = vld [vmem:[#allocation7 + $0x1] sm:$0x1]
    %v163 = vlaneseq
    %v164 = vshrl.u32 %v163, 7
    %v165 = vsub.s32 0, %v164
    %v166 = vrot.slane %v162, %v165
    %167 = vmatprep.subr.mxu0 0.0
    %168 = vmatpush1.msra.mxu0 %v146
    %169 = vmatprep.subr.mxu0 0.0
    %170 = vmatpush1.msra.mxu0 %v147
    %171 = vmatprep.subr.mxu0 0.0
    %172 = vmatpush1.msra.mxu0 %v148
    %173 = vmatprep.subr.mxu0 0.0
    %174 = vmatpush1.msra.mxu0 %v149
    %175 = vmatprep.subr.mxu0 0.0
    %176 = vmatpush1.msra.mxu0 %v150
    %177 = vmatprep.subr.mxu0 0.0
    %178 = vmatpush1.msra.mxu0 %v151
    %179 = vmatprep.subr.mxu0 0.0
    %180 = vmatpush1.msra.mxu0 %v152
    %181 = vmatprep.subr.mxu0 0.0
    %182 = vmatpush1.msra.mxu0 %v153
    %183 = vmatprep.subr.mxu0 0.0
    %184 = vmatpush1.msra.mxu0 %v154
    %185 = vmatprep.subr.mxu0 0.0
    %186 = vmatpush1.msra.mxu0 %v155
    %187 = vmatprep.subr.mxu0 0.0
    %188 = vmatpush1.msra.mxu0 %v156
    %189 = vmatprep.subr.mxu0 0.0
    %190 = vmatpush1.msra.mxu0 %v157
    %191 = vmatprep.subr.mxu0 0.0
    %192 = vmatpush1.msra.mxu0 %v158
    %193 = vmatprep.subr.mxu0 0.0
    %194 = vmatpush1.msra.mxu0 %v159
    %195 = vmatprep.subr.mxu0 0.0
    %196 = vmatpush1.msra.mxu0 %v160
    %197 = vmatprep.subr.mxu0 0.0
    %198 = vmatpush1.msra.mxu0 %v161
    %199 = vmatprep.subr.mxu0 0.0
    %200 = vmatpush1.msra.mxu0 0.0
    %201 = vmatprep.subr.mxu0 0.0
    %202 = vmatpush1.msra.mxu0 0.0
    %203 = vmatprep.subr.mxu0 0.0
    %204 = vmatpush1.msra.mxu0 0.0
    %205 = vmatprep.subr.mxu0 0.0
    %206 = vmatpush1.msra.mxu0 0.0
    %207 = vmatprep.subr.mxu0 0.0
    %208 = vmatpush1.msra.mxu0 0.0
    %209 = vmatprep.subr.mxu0 0.0
    %210 = vmatpush1.msra.mxu0 0.0
    %211 = vmatprep.subr.mxu0 0.0
    %212 = vmatpush1.msra.mxu0 0.0
    %213 = vmatprep.subr.mxu0 0.0
    %214 = vmatpush1.msra.mxu0 0.0
    %215 = vmatprep.subr.mxu0 0.0
    %216 = vmatpush1.msra.mxu0 0.0
    %217 = vmatprep.subr.mxu0 0.0
    %218 = vmatpush1.msra.mxu0 0.0
    %219 = vmatprep.subr.mxu0 0.0
    %220 = vmatpush1.msra.mxu0 0.0
    %221 = vmatprep.subr.mxu0 0.0
    %222 = vmatpush1.msra.mxu0 0.0
    %223 = vmatprep.subr.mxu0 0.0
    %224 = vmatpush1.msra.mxu0 0.0
    %225 = vmatprep.subr.mxu0 0.0
    %226 = vmatpush1.msra.mxu0 0.0
    %227 = vmatprep.subr.mxu0 0.0
    %228 = vmatpush1.msra.mxu0 0.0
    %229 = vmatprep.subr.mxu0 0.0
    %230 = vmatpush1.msra.mxu0 0.0
    %231 = vmatprep.mubr.f32.mxu0 0.0
    %232 = vmatmul.mubr.f32.gmra.mrb[0].mxu0 %v144
    %v233 = vpop.f32.mrb[0].mxu0
    %v234 = vadd.f32 %v166, %v233
    %v235 = vpop.f32.mrb[0].mxu0
    %236 = vdwg.mxu0
    %vm237 = vcmp.gt.f32.partialorder %v234, 0.0
    %v238 = vmul.f32 %v234, 0.01
    %v239 = vsel %vm237, %v234, %v238
    %s240 = scalar_lea.vmem [#allocation5], 256
    %v241 = vld [vmem:[%s240] sm:$0xff]
    %v242 = vld [vmem:[%s240 + $0x8] sm:$0xff]
    %v243 = vld [vmem:[%s240 + $0x10] sm:$0xff]
    %v244 = vld [vmem:[%s240 + $0x18] sm:$0xff]
    %v245 = vld [vmem:[%s240 + $0x20] sm:$0xff]
    %v246 = vld [vmem:[%s240 + $0x28] sm:$0xff]
    %v247 = vld [vmem:[%s240 + $0x30] sm:$0xff]
    %v248 = vld [vmem:[%s240 + $0x38] sm:$0xff]
    %v249 = vld [vmem:[%s240 + $0x40] sm:$0xff]
    %v250 = vld [vmem:[%s240 + $0x48] sm:$0xff]
    %v251 = vld [vmem:[%s240 + $0x50] sm:$0xff]
    %v252 = vld [vmem:[%s240 + $0x58] sm:$0xff]
    %v253 = vld [vmem:[%s240 + $0x60] sm:$0xff]
    %v254 = vld [vmem:[%s240 + $0x68] sm:$0xff]
    %v255 = vld [vmem:[%s240 + $0x70] sm:$0xff]
    %v256 = vld [vmem:[%s240 + $0x78] sm:$0xff]
    %v257 = vld [vmem:[#allocation7 + $0x2] sm:$0x1]
    %v258 = vlaneseq
    %v259 = vshrl.u32 %v258, 7
    %v260 = vsub.s32 0, %v259
    %v261 = vrot.slane %v257, %v260
    %262 = vmatprep.subr.mxu0 0.0
    %263 = vmatpush1.msra.mxu0 %v241
    %264 = vmatprep.subr.mxu0 0.0
    %265 = vmatpush1.msra.mxu0 %v242
    %266 = vmatprep.subr.mxu0 0.0
    %267 = vmatpush1.msra.mxu0 %v243
    %268 = vmatprep.subr.mxu0 0.0
    %269 = vmatpush1.msra.mxu0 %v244
    %270 = vmatprep.subr.mxu0 0.0
    %271 = vmatpush1.msra.mxu0 %v245
    %272 = vmatprep.subr.mxu0 0.0
    %273 = vmatpush1.msra.mxu0 %v246
    %274 = vmatprep.subr.mxu0 0.0
    %275 = vmatpush1.msra.mxu0 %v247
    %276 = vmatprep.subr.mxu0 0.0
    %277 = vmatpush1.msra.mxu0 %v248
    %278 = vmatprep.subr.mxu0 0.0
    %279 = vmatpush1.msra.mxu0 %v249
    %280 = vmatprep.subr.mxu0 0.0
    %281 = vmatpush1.msra.mxu0 %v250
    %282 = vmatprep.subr.mxu0 0.0
    %283 = vmatpush1.msra.mxu0 %v251
    %284 = vmatprep.subr.mxu0 0.0
    %285 = vmatpush1.msra.mxu0 %v252
    %286 = vmatprep.subr.mxu0 0.0
    %287 = vmatpush1.msra.mxu0 %v253
    %288 = vmatprep.subr.mxu0 0.0
    %289 = vmatpush1.msra.mxu0 %v254
    %290 = vmatprep.subr.mxu0 0.0
    %291 = vmatpush1.msra.mxu0 %v255
    %292 = vmatprep.subr.mxu0 0.0
    %293 = vmatpush1.msra.mxu0 %v256
    %294 = vmatprep.subr.mxu0 0.0
    %295 = vmatpush1.msra.mxu0 0.0
    %296 = vmatprep.subr.mxu0 0.0
    %297 = vmatpush1.msra.mxu0 0.0
    %298 = vmatprep.subr.mxu0 0.0
    %299 = vmatpush1.msra.mxu0 0.0
    %300 = vmatprep.subr.mxu0 0.0
    %301 = vmatpush1.msra.mxu0 0.0
    %302 = vmatprep.subr.mxu0 0.0
    %303 = vmatpush1.msra.mxu0 0.0
    %304 = vmatprep.subr.mxu0 0.0
    %305 = vmatpush1.msra.mxu0 0.0
    %306 = vmatprep.subr.mxu0 0.0
    %307 = vmatpush1.msra.mxu0 0.0
    %308 = vmatprep.subr.mxu0 0.0
    %309 = vmatpush1.msra.mxu0 0.0
    %310 = vmatprep.subr.mxu0 0.0
    %311 = vmatpush1.msra.mxu0 0.0
    %312 = vmatprep.subr.mxu0 0.0
    %313 = vmatpush1.msra.mxu0 0.0
    %314 = vmatprep.subr.mxu0 0.0
    %315 = vmatpush1.msra.mxu0 0.0
    %316 = vmatprep.subr.mxu0 0.0
    %317 = vmatpush1.msra.mxu0 0.0
    %318 = vmatprep.subr.mxu0 0.0
    %319 = vmatpush1.msra.mxu0 0.0
    %320 = vmatprep.subr.mxu0 0.0
    %321 = vmatpush1.msra.mxu0 0.0
    %322 = vmatprep.subr.mxu0 0.0
    %323 = vmatpush1.msra.mxu0 0.0
    %324 = vmatprep.subr.mxu0 0.0
    %325 = vmatpush1.msra.mxu0 0.0
    %326 = vmatprep.mubr.f32.mxu0 0.0
    %327 = vmatmul.mubr.f32.gmra.mrb[0].mxu0 %v239
    %v328 = vpop.f32.mrb[0].mxu0
    %v329 = vadd.f32 %v261, %v328
    %v330 = vpop.f32.mrb[0].mxu0
    %331 = vdwg.mxu0
    %v332 = vadd.f32 %v329, %v144
    %vm333 = vcmp.gt.f32.partialorder %v332, 0.0
    %v334 = vmul.f32 %v332, 0.01
    %v335 = vsel %vm333, %v332, %v334
    %s336 = scalar_lea.vmem [#allocation5], 384
    %v337 = vld [vmem:[%s336] sm:$0xff]
    %v338 = vld [vmem:[%s336 + $0x8] sm:$0xff]
    %v339 = vld [vmem:[%s336 + $0x10] sm:$0xff]
    %v340 = vld [vmem:[%s336 + $0x18] sm:$0xff]
    %v341 = vld [vmem:[%s336 + $0x20] sm:$0xff]
    %v342 = vld [vmem:[%s336 + $0x28] sm:$0xff]
    %v343 = vld [vmem:[%s336 + $0x30] sm:$0xff]
    %v344 = vld [vmem:[%s336 + $0x38] sm:$0xff]
    %v345 = vld [vmem:[%s336 + $0x40] sm:$0xff]
    %v346 = vld [vmem:[%s336 + $0x48] sm:$0xff]
    %v347 = vld [vmem:[%s336 + $0x50] sm:$0xff]
    %v348 = vld [vmem:[%s336 + $0x58] sm:$0xff]
    %v349 = vld [vmem:[%s336 + $0x60] sm:$0xff]
    %v350 = vld [vmem:[%s336 + $0x68] sm:$0xff]
    %v351 = vld [vmem:[%s336 + $0x70] sm:$0xff]
    %v352 = vld [vmem:[%s336 + $0x78] sm:$0xff]
    %v353 = vld [vmem:[#allocation7 + $0x3] sm:$0x1]
    %v354 = vlaneseq
    %v355 = vshrl.u32 %v354, 7
    %v356 = vsub.s32 0, %v355
    %v357 = vrot.slane %v353, %v356
    %358 = vmatprep.subr.mxu0 0.0
    %359 = vmatpush1.msra.mxu0 %v337
    %360 = vmatprep.subr.mxu0 0.0
    %361 = vmatpush1.msra.mxu0 %v338
    %362 = vmatprep.subr.mxu0 0.0
    %363 = vmatpush1.msra.mxu0 %v339
    %364 = vmatprep.subr.mxu0 0.0
    %365 = vmatpush1.msra.mxu0 %v340
    %366 = vmatprep.subr.mxu0 0.0
    %367 = vmatpush1.msra.mxu0 %v341
    %368 = vmatprep.subr.mxu0 0.0
    %369 = vmatpush1.msra.mxu0 %v342
    %370 = vmatprep.subr.mxu0 0.0
    %371 = vmatpush1.msra.mxu0 %v343
    %372 = vmatprep.subr.mxu0 0.0
    %373 = vmatpush1.msra.mxu0 %v344
    %374 = vmatprep.subr.mxu0 0.0
    %375 = vmatpush1.msra.mxu0 %v345
    %376 = vmatprep.subr.mxu0 0.0
    %377 = vmatpush1.msra.mxu0 %v346
    %378 = vmatprep.subr.mxu0 0.0
    %379 = vmatpush1.msra.mxu0 %v347
    %380 = vmatprep.subr.mxu0 0.0
    %381 = vmatpush1.msra.mxu0 %v348
    %382 = vmatprep.subr.mxu0 0.0
    %383 = vmatpush1.msra.mxu0 %v349
    %384 = vmatprep.subr.mxu0 0.0
    %385 = vmatpush1.msra.mxu0 %v350
    %386 = vmatprep.subr.mxu0 0.0
    %387 = vmatpush1.msra.mxu0 %v351
    %388 = vmatprep.subr.mxu0 0.0
    %389 = vmatpush1.msra.mxu0 %v352
    %390 = vmatprep.subr.mxu0 0.0
    %391 = vmatpush1.msra.mxu0 0.0
    %392 = vmatprep.subr.mxu0 0.0
    %393 = vmatpush1.msra.mxu0 0.0
    %394 = vmatprep.subr.mxu0 0.0
    %395 = vmatpush1.msra.mxu0 0.0
    %396 = vmatprep.subr.mxu0 0.0
    %397 = vmatpush1.msra.mxu0 0.0
    %398 = vmatprep.subr.mxu0 0.0
    %399 = vmatpush1.msra.mxu0 0.0
    %400 = vmatprep.subr.mxu0 0.0
    %401 = vmatpush1.msra.mxu0 0.0
    %402 = vmatprep.subr.mxu0 0.0
    %403 = vmatpush1.msra.mxu0 0.0
    %404 = vmatprep.subr.mxu0 0.0
    %405 = vmatpush1.msra.mxu0 0.0
    %406 = vmatprep.subr.mxu0 0.0
    %407 = vmatpush1.msra.mxu0 0.0
    %408 = vmatprep.subr.mxu0 0.0
    %409 = vmatpush1.msra.mxu0 0.0
    %410 = vmatprep.subr.mxu0 0.0
    %411 = vmatpush1.msra.mxu0 0.0
    %412 = vmatprep.subr.mxu0 0.0
    %413 = vmatpush1.msra.mxu0 0.0
    %414 = vmatprep.subr.mxu0 0.0
    %415 = vmatpush1.msra.mxu0 0.0
    %416 = vmatprep.subr.mxu0 0.0
    %417 = vmatpush1.msra.mxu0 0.0
    %418 = vmatprep.subr.mxu0 0.0
    %419 = vmatpush1.msra.mxu0 0.0
    %420 = vmatprep.subr.mxu0 0.0
    %421 = vmatpush1.msra.mxu0 0.0
    %422 = vmatprep.mubr.f32.mxu0 0.0
    %423 = vmatmul.mubr.f32.gmra.mrb[0].mxu0 %v335
    %v424 = vpop.f32.mrb[0].mxu0
    %v425 = vadd.f32 %v357, %v424
    %v426 = vpop.f32.mrb[0].mxu0
    %427 = vdwg.mxu0
    %v428 = vlaneseq
    %v429 = vand.u32 %v428, 127
    %vm430 = vcmp.lt.s32.totalorder %v429, 48
    %vm431 = vcmp.gt.f32.partialorder %v425, 0.0
    %v432 = vmul.f32 %v425, 0.01
    %v433 = vsel %vm431, %v425, %v432
    %v434 = vsel %vm430, %v433, %v425
    %s435 = scalar_lea.vmem [#allocation5], 512
    %v436 = vld [vmem:[%s435] sm:$0xff]
    %v437 = vld [vmem:[%s435 + $0x8] sm:$0xff]
    %v438 = vld [vmem:[%s435 + $0x10] sm:$0xff]
    %v439 = vld [vmem:[%s435 + $0x18] sm:$0xff]
    %v440 = vld [vmem:[%s435 + $0x20] sm:$0xff]
    %v441 = vld [vmem:[%s435 + $0x28] sm:$0xff]
    %v442 = vld [vmem:[%s435 + $0x30] sm:$0xff]
    %v443 = vld [vmem:[%s435 + $0x38] sm:$0xff]
    %v444 = vld [vmem:[%s435 + $0x40] sm:$0xff]
    %v445 = vld [vmem:[%s435 + $0x48] sm:$0xff]
    %v446 = vld [vmem:[%s435 + $0x50] sm:$0xff]
    %v447 = vld [vmem:[%s435 + $0x58] sm:$0xff]
    %v448 = vld [vmem:[%s435 + $0x60] sm:$0xff]
    %v449 = vld [vmem:[%s435 + $0x68] sm:$0xff]
    %v450 = vld [vmem:[%s435 + $0x70] sm:$0xff]
    %v451 = vld [vmem:[%s435 + $0x78] sm:$0xff]
    %v452 = vld [vmem:[#allocation7 + $0x4] sm:$0x1]
    %v453 = vlaneseq
    %v454 = vshrl.u32 %v453, 7
    %v455 = vsub.s32 0, %v454
    %v456 = vrot.slane %v452, %v455
    %457 = vmatprep.subr.mxu0 0.0
    %458 = vmatpush1.msra.mxu0 %v436
    %459 = vmatprep.subr.mxu0 0.0
    %460 = vmatpush1.msra.mxu0 %v437
    %461 = vmatprep.subr.mxu0 0.0
    %462 = vmatpush1.msra.mxu0 %v438
    %463 = vmatprep.subr.mxu0 0.0
    %464 = vmatpush1.msra.mxu0 %v439
    %465 = vmatprep.subr.mxu0 0.0
    %466 = vmatpush1.msra.mxu0 %v440
    %467 = vmatprep.subr.mxu0 0.0
    %468 = vmatpush1.msra.mxu0 %v441
    %469 = vmatprep.subr.mxu0 0.0
    %470 = vmatpush1.msra.mxu0 %v442
    %471 = vmatprep.subr.mxu0 0.0
    %472 = vmatpush1.msra.mxu0 %v443
    %473 = vmatprep.subr.mxu0 0.0
    %474 = vmatpush1.msra.mxu0 %v444
    %475 = vmatprep.subr.mxu0 0.0
    %476 = vmatpush1.msra.mxu0 %v445
    %477 = vmatprep.subr.mxu0 0.0
    %478 = vmatpush1.msra.mxu0 %v446
    %479 = vmatprep.subr.mxu0 0.0
    %480 = vmatpush1.msra.mxu0 %v447
    %481 = vmatprep.subr.mxu0 0.0
    %482 = vmatpush1.msra.mxu0 %v448
    %483 = vmatprep.subr.mxu0 0.0
    %484 = vmatpush1.msra.mxu0 %v449
    %485 = vmatprep.subr.mxu0 0.0
    %486 = vmatpush1.msra.mxu0 %v450
    %487 = vmatprep.subr.mxu0 0.0
    %488 = vmatpush1.msra.mxu0 %v451
    %489 = vmatprep.subr.mxu0 0.0
    %490 = vmatpush1.msra.mxu0 0.0
    %491 = vmatprep.subr.mxu0 0.0
    %492 = vmatpush1.msra.mxu0 0.0
    %493 = vmatprep.subr.mxu0 0.0
    %494 = vmatpush1.msra.mxu0 0.0
    %495 = vmatprep.subr.mxu0 0.0
    %496 = vmatpush1.msra.mxu0 0.0
    %497 = vmatprep.subr.mxu0 0.0
    %498 = vmatpush1.msra.mxu0 0.0
    %499 = vmatprep.subr.mxu0 0.0
    %500 = vmatpush1.msra.mxu0 0.0
    %501 = vmatprep.subr.mxu0 0.0
    %502 = vmatpush1.msra.mxu0 0.0
    %503 = vmatprep.subr.mxu0 0.0
    %504 = vmatpush1.msra.mxu0 0.0
    %505 = vmatprep.subr.mxu0 0.0
    %506 = vmatpush1.msra.mxu0 0.0
    %507 = vmatprep.subr.mxu0 0.0
    %508 = vmatpush1.msra.mxu0 0.0
    %509 = vmatprep.subr.mxu0 0.0
    %510 = vmatpush1.msra.mxu0 0.0
    %511 = vmatprep.subr.mxu0 0.0
    %512 = vmatpush1.msra.mxu0 0.0
    %513 = vmatprep.subr.mxu0 0.0
    %514 = vmatpush1.msra.mxu0 0.0
    %515 = vmatprep.subr.mxu0 0.0
    %516 = vmatpush1.msra.mxu0 0.0
    %517 = vmatprep.subr.mxu0 0.0
    %518 = vmatpush1.msra.mxu0 0.0
    %519 = vmatprep.subr.mxu0 0.0
    %520 = vmatpush1.msra.mxu0 0.0
    %521 = vmatprep.mubr.f32.mxu0 0.0
    %522 = vmatmul.mubr.f32.gmra.mrb[0].mxu0 %v434
    %v523 = vpop.f32.mrb[0].mxu0
    %v524 = vadd.f32 %v456, %v523
    %v525 = vpop.f32.mrb[0].mxu0
    %526 = vdwg.mxu0
    %vm527 = vcmp.gt.f32.partialorder %v524, 0.0
    %v528 = vmul.f32 %v524, 0.01
    %v529 = vsel %vm527, %v524, %v528
    %530 = vst [vmem:[#allocation8] sm:$0xff] %v529
    // Predicated region
    $region26: #{tpu_custom_call.1} parent=1 // pred_check
      _
    $region27: #{tpu_custom_call.1} parent=1 // pred_check_branch
      %532 = sbr.rel (0) target = $region29
    $region28: #{tpu_custom_call.1} parent=1 // pred_region
      %s534 = ssub.s32 128, 128
      %535 = vsyncadd [#allocation4], %s534
      %s537 = sshll.u32 [#allocation8], 4
      %s538 = int_to_ptr.vmem [resolvable:$true] %s537
      %540 = dma.vmem_to_hbm [thread:$0]  %s538, 128, %s3, [#allocation4]
    $region29: #{tpu_custom_call.1} parent=1 // pred_fallthru
      _
    // Predicated region
    $region30: #{tpu_custom_call.1} parent=1 // pred_check
      _
    $region31: #{tpu_custom_call.1} parent=1 // pred_check_branch
      %542 = sbr.rel (0) target = $region33
    $region32: #{tpu_custom_call.1} parent=1 // pred_region
      %543 = dma.done [#allocation4], 128
    $region33: #{tpu_custom_call.1} parent=1 // pred_fallthru
      _
    %544 = vsyncpa [#allocation3], 1
    %545 = vsyncpa [#allocation6], 1
    %546 = vsyncpa [#allocation4], 1

</llo_original>
